<compile_context>
chip_gen: v5e
topology: v5e:2x2
jax: 0.10.0
libtpu: 0.0.40
codegen_flags: <defaults>
</compile_context>

<pallas_src>
import math
import functools

import jax
import jax.numpy as jnp
from jax.experimental import pallas as pl
from jax.experimental.pallas import tpu as pltpu

NEG_INF = float(jnp.finfo(jnp.float32).min)


# ----------------------------- in-kernel math helpers -----------------------------
def _layernorm(x, g, b, eps=1e-5):
    mean = jnp.mean(x, axis=-1, keepdims=True)
    var = jnp.mean((x - mean) ** 2, axis=-1, keepdims=True)
    return (x - mean) * jax.lax.rsqrt(var + eps) * g + b


def _gelu(x):
    # matches the module's tanh-approximation gelu (EUP tanh)
    return 0.5 * x * (1.0 + jnp.tanh(math.sqrt(2.0 / math.pi) * (x + 0.044715 * x ** 3)))


def _softmax(scores):
    m = jnp.max(scores, axis=-1, keepdims=True)
    e = jnp.exp(scores - m)
    denom = jnp.sum(e, axis=-1, keepdims=True)
    return e * pl.reciprocal(denom, approx=True)   # divide on the EUP slot


# ----------------------------- Pallas kernels -----------------------------
def embed_ln_kernel(emb_ref, pos_ref, g_ref, b_ref, out_ref):
    # token embeddings (1,TQ,D) + positional embeddings (TQ,D) -> layernorm, bf16 out
    x = emb_ref[0].astype(jnp.float32) + pos_ref[...].astype(jnp.float32)
    out_ref[0] = _layernorm(x, g_ref[...], b_ref[...]).astype(out_ref.dtype)


def kv_proj_kernel(x_ref, wkv_ref, bkv_ref, k_ref, v_ref):
    """Fused K/V projection for one (batch, kv-tile): (TKV,D) @ (D,2D), split to K and V."""
    D = x_ref.shape[2]
    kv = (jnp.dot(x_ref[0], wkv_ref[...], preferred_element_type=jnp.float32)
          + bkv_ref[...]).astype(jnp.bfloat16)                   # (TKV, 2D)
    k_ref[0] = kv[:, :D]
    v_ref[0] = kv[:, D:]


def attn_ln_kernel(causal, num_heads, xq_ref, k_ref, v_ref, pad_ref,
                   wq_ref, bq_ref, wo_ref, bo_ref, g_ref, b_ref, out_ref):
    """One query tile of (self|cross) attention + residual + layernorm.

    xq_ref:  (1, TQ, D)  bf16 query-tile of hidden states
    k_ref:   (1, Skv, D) bf16 pre-projected keys   (heads = contiguous hd blocks of D)
    v_ref:   (1, Skv, D) bf16 pre-projected values
    pad_ref: (1, 1, Skv) f32  key padding mask (1 = keep)
    wq: (D, D) bf16 with 1/sqrt(hd) pre-folded     wo: (D, D) bf16
    bq/bo/g/b: (1, D) f32
    """
    TQ, D = xq_ref.shape[1], xq_ref.shape[2]
    Skv = k_ref.shape[1]
    H = num_heads
    hd = D // H

    xq = xq_ref[0]                                   # (TQ, D) bf16
    residual = xq.astype(jnp.float32)

    # fused Q projection: a single lane-dense (TQ,D) x (D,D) MXU matmul
    q = (jnp.dot(xq, wq_ref[...], preferred_element_type=jnp.float32)
         + bq_ref[...]).astype(jnp.bfloat16)         # (TQ, D)
    k = k_ref[0]                                     # (Skv, D) bf16
    v = v_ref[0]                                     # (Skv, D) bf16

    # masks built in-kernel: causal (iota over the tile) AND key-padding row
    key_ok = pad_ref[0] > 0.5                        # (1, Skv) bool
    if causal:
        row = jax.lax.broadcasted_iota(jnp.int32, (TQ, Skv), 0) + pl.program_id(1) * TQ
        col = jax.lax.broadcasted_iota(jnp.int32, (TQ, Skv), 1)
        allowed = (col <= row) & key_ok              # (TQ, Skv)
    else:
        allowed = jnp.broadcast_to(key_ok, (TQ, Skv))

    # TODO(synk): for long Skv switch to flash-style K-tiling (online softmax with m/l/acc
    #             scratch and an 'arbitrary' K grid axis) instead of full (TQ,Skv) scores.
    ctx_heads = []
    for h in range(H):                               # static lane slices; no head reshapes
        q_h = q[:, h * hd:(h + 1) * hd]              # (TQ, hd)
        k_h = k[:, h * hd:(h + 1) * hd]              # (Skv, hd)
        v_h = v[:, h * hd:(h + 1) * hd]              # (Skv, hd)
        s_h = jnp.einsum("qd,kd->qk", q_h, k_h,
                         preferred_element_type=jnp.float32)     # (TQ, Skv) f32
        s_h = jnp.where(allowed, s_h, NEG_INF)
        p_h = _softmax(s_h).astype(jnp.bfloat16)
        ctx_heads.append(jnp.einsum("qk,kd->qd", p_h, v_h,
                                    preferred_element_type=jnp.float32))
    # lane-concat over heads == PyTorch's transpose+reshape(bsz, tgt, embed_dim)
    ctx = jnp.concatenate(ctx_heads, axis=-1).astype(jnp.bfloat16)   # (TQ, D)

    # single fused output projection (TQ,D) x (D,D)
    out = jnp.dot(ctx, wo_ref[...], preferred_element_type=jnp.float32) + bo_ref[...]
    out_ref[0] = _layernorm(residual + out, g_ref[...], b_ref[...]).astype(out_ref.dtype)


def ffn_ln_kernel(x_ref, w1_ref, b1_ref, w2_ref, b2_ref, g_ref, b_ref, out_ref):
    x = x_ref[0]                                     # (TQ, D) bf16
    xf = x.astype(jnp.float32)
    h = jnp.dot(x, w1_ref[...], preferred_element_type=jnp.float32) + b1_ref[...]
    h = _gelu(h).astype(jnp.bfloat16)                # (TQ, F)
    y = jnp.dot(h, w2_ref[...], preferred_element_type=jnp.float32) + b2_ref[...]
    out_ref[0] = _layernorm(xf + y, g_ref[...], b_ref[...]).astype(out_ref.dtype)


# ----------------------------- pallas_call plumbing -----------------------------
@functools.lru_cache(maxsize=None)
def _vmem_limit_bytes():
    """~75% of the chip's physical VMEM (96 MiB on v5e/v6e, 48 MiB on v7x)."""
    try:
        phys = int(pltpu.get_tpu_info().vmem_capacity_bytes)
        return (phys // 4) * 3
    except Exception:
        return 48 * 1024 * 1024        # conservative cross-generation fallback


def _compiler_params():
    return pltpu.CompilerParams(
        dimension_semantics=("parallel", "parallel"),
        vmem_limit_bytes=_vmem_limit_bytes())


@functools.lru_cache(maxsize=None)
def _single_buffer_weights_supported():
    """Probe whether pipeline_mode=pl.Buffered(1) is accepted by this Pallas/Mosaic build."""
    try:
        def _k(x_ref, w_ref, o_ref):
            o_ref[...] = x_ref[...] + w_ref[...]
        x = jnp.zeros((16, 128), jnp.float32)
        w = jnp.ones((8, 128), jnp.float32)
        out = pl.pallas_call(
            _k,
            out_shape=jax.ShapeDtypeStruct((16, 128), jnp.float32),
            grid=(2,),
            in_specs=[pl.BlockSpec((8, 128), lambda i: (i, 0)),
                      pl.BlockSpec((8, 128), lambda i: (0, 0),
                                   pipeline_mode=pl.Buffered(1))],
            out_specs=pl.BlockSpec((8, 128), lambda i: (i, 0)),
        )(x, w)
        jax.block_until_ready(out)
        return True
    except Exception:
        return False


def _rep_spec(p):
    """Grid-invariant (replicated) full-array BlockSpec for a parameter.

    Constant index map -> double buffering gives zero overlap benefit, so single-buffer
    the weights when the runtime supports pl.Buffered(1) (halves resident weight VMEM).
    """
    nd = p.ndim
    idx = lambda b, q, _nd=nd: (0,) * _nd
    if _single_buffer_weights_supported():
        return pl.BlockSpec(p.shape, idx, pipeline_mode=pl.Buffered(1))
    return pl.BlockSpec(p.shape, idx)


def embed_ln_call(inputs_embeds, pos_embeds, g, b, q_tile):
    B, S, D = inputs_embeds.shape
    n_q = S // q_tile
    return pl.pallas_call(
        embed_ln_kernel,
        out_shape=jax.ShapeDtypeStruct((B, S, D), jnp.bfloat16),
        grid=(B, n_q),
        in_specs=[
            pl.BlockSpec((1, q_tile, D), lambda b_, q_: (b_, q_, 0)),
            pl.BlockSpec((q_tile, D), lambda b_, q_: (q_, 0)),
            _rep_spec(g), _rep_spec(b),
        ],
        out_specs=pl.BlockSpec((1, q_tile, D), lambda b_, q_: (b_, q_, 0)),
        compiler_params=_compiler_params(),
    )(inputs_embeds, pos_embeds, g, b)


def kv_proj_call(x, p, kv_tile):
    """Project K and V once per layer (grid over (batch, kv-tiles)); heads stay interleaved
    as contiguous hd-wide blocks along D (same layout PyTorch's view/transpose implies)."""
    B, Skv, D = x.shape
    n_kv = Skv // kv_tile
    weights = (p["wkv"], p["bkv"])
    io_spec = pl.BlockSpec((1, kv_tile, D), lambda b_, k_: (b_, k_, 0))
    return pl.pallas_call(
        kv_proj_kernel,
        out_shape=(jax.ShapeDtypeStruct((B, Skv, D), jnp.bfloat16),
                   jax.ShapeDtypeStruct((B, Skv, D), jnp.bfloat16)),
        grid=(B, n_kv),
        in_specs=[io_spec] + [_rep_spec(w) for w in weights],
        out_specs=(io_spec, io_spec),
        compiler_params=_compiler_params(),
    )(x, *weights)


def attn_ln_call(x, k, v, pad_mask, p, causal, num_heads, q_tile):
    B, S, D = x.shape
    Skv = k.shape[1]
    n_q = S // q_tile
    weights = (p["wq"], p["bq"], p["wo"], p["bo"], p["ln_g"], p["ln_b"])
    in_specs = [
        pl.BlockSpec((1, q_tile, D), lambda b_, q_: (b_, q_, 0)),   # query tile
        pl.BlockSpec((1, Skv, D), lambda b_, q_: (b_, 0, 0)),       # pre-projected K
        pl.BlockSpec((1, Skv, D), lambda b_, q_: (b_, 0, 0)),       # pre-projected V
        pl.BlockSpec((1, 1, Skv), lambda b_, q_: (b_, 0, 0)),       # key padding row
    ] + [_rep_spec(w) for w in weights]
    return pl.pallas_call(
        functools.partial(attn_ln_kernel, causal, num_heads),
        out_shape=jax.ShapeDtypeStruct((B, S, D), jnp.bfloat16),
        grid=(B, n_q),
        in_specs=in_specs,
        out_specs=pl.BlockSpec((1, q_tile, D), lambda b_, q_: (b_, q_, 0)),
        compiler_params=_compiler_params(),
    )(x, k, v, pad_mask, *weights)


def ffn_ln_call(x, p, q_tile):
    B, S, D = x.shape
    n_q = S // q_tile
    weights = (p["w1"], p["b1"], p["w2"], p["b2"], p["ln_g"], p["ln_b"])
    in_specs = [pl.BlockSpec((1, q_tile, D), lambda b_, q_: (b_, q_, 0))] \
        + [_rep_spec(w) for w in weights]
    return pl.pallas_call(
        ffn_ln_kernel,
        out_shape=jax.ShapeDtypeStruct((B, S, D), jnp.bfloat16),
        grid=(B, n_q),
        in_specs=in_specs,
        out_specs=pl.BlockSpec((1, q_tile, D), lambda b_, q_: (b_, q_, 0)),
        compiler_params=_compiler_params(),
    )(x, *weights)


# ----------------------------- parameter init (deterministic) -----------------------------
def _attn_params(key, D, H, init_std):
    hd = D // H
    scaling = hd ** -0.5
    kq, kk, kv_, ko = jax.random.split(key, 4)

    def lin(k, din, dout):   # PyTorch x @ W.T with W [out,in] -> stored as [in,out]
        return init_std * jax.random.normal(k, (din, dout), jnp.float32)

    # 1/sqrt(hd) folded into Wq (and bq, zero at init) -> no in-kernel scaling multiply
    wq = (lin(kq, D, D) * scaling).astype(jnp.bfloat16)
    wkv = jnp.concatenate([lin(kk, D, D), lin(kv_, D, D)], axis=1).astype(jnp.bfloat16)
    wo = lin(ko, D, D).astype(jnp.bfloat16)
    return {
        "wq": wq, "bq": jnp.zeros((1, D), jnp.float32),
        "wkv": wkv, "bkv": jnp.zeros((1, 2 * D), jnp.float32),
        "wo": wo, "bo": jnp.zeros((1, D), jnp.float32),
        "ln_g": jnp.ones((1, D), jnp.float32),
        "ln_b": jnp.zeros((1, D), jnp.float32),
    }


def _ffn_params(key, D, F, init_std):
    k1, k2 = jax.random.split(key)
    return {
        "w1": (init_std * jax.random.normal(k1, (D, F), jnp.float32)).astype(jnp.bfloat16),
        "b1": jnp.zeros((1, F), jnp.float32),
        "w2": (init_std * jax.random.normal(k2, (F, D), jnp.float32)).astype(jnp.bfloat16),
        "b2": jnp.zeros((1, D), jnp.float32),
        "ln_g": jnp.ones((1, D), jnp.float32),
        "ln_b": jnp.zeros((1, D), jnp.float32),
    }


def init_layer_params(key, D, H, F, init_std):
    ks, kc, kf = jax.random.split(key, 3)
    return {"self": _attn_params(ks, D, H, init_std),
            "cross": _attn_params(kc, D, H, init_std),
            "ffn": _ffn_params(kf, D, F, init_std)}


def init_decoder_params(key, vocab, D, H, F, padding_idx, max_pos, n_layers, init_std=0.02):
    k_tok, k_pos, k_layers = jax.random.split(key, 3)
    embed_tokens = init_std * jax.random.normal(k_tok, (vocab, D), jnp.float32)
    embed_tokens = embed_tokens.at[padding_idx].set(0.0).astype(jnp.bfloat16)
    # PositionalEmbedding keeps nn.Embedding default init N(0,1), offset = 2
    pos_embed = jax.random.normal(k_pos, (max_pos + 2, D), jnp.float32).astype(jnp.bfloat16)
    layers = tuple(init_layer_params(k, D, H, F, init_std)
                   for k in jax.random.split(k_layers, n_layers))
    return {
        "num_heads": H,
        "embed_tokens": embed_tokens,
        "pos_embed": pos_embed,
        "embed_ln_g": jnp.ones((1, D), jnp.float32),
        "embed_ln_b": jnp.zeros((1, D), jnp.float32),
        "layers": layers,
    }


# ----------------------------- forward (eval: dropout / layerdrop are identity) -----------------------------
def transformer_decoder_forward(input_ids, attention_mask,
                                encoder_hidden_states, encoder_attention_mask,
                                params, q_tile=128, kv_tile=256):
    B, S = input_ids.shape
    Se = encoder_hidden_states.shape[1]
    H = params["num_heads"]

    q_tile = min(q_tile, S)
    kv_tile_dec = min(kv_tile, S)
    kv_tile_enc = min(kv_tile, Se)
    assert S % q_tile == 0 and S % kv_tile_dec == 0 and Se % kv_tile_enc == 0

    # TODO(synk): the embedding gather stays in XLA; fusing it into the embed-LN kernel
    #             (scalar-prefetched ids + per-row DMA gather) would remove one (B,S,D)
    #             HBM round trip.
    inputs_embeds = params["embed_tokens"][input_ids]            # (B,S,D) bf16 (embed_scale=1.0)
    pos_embeds = params["pos_embed"][jnp.arange(S) + 2]          # (S,D)  bf16 (offset=2)

    # only the 1-D padding rows are handed to the kernels; causal mask is built in-kernel
    self_pad = attention_mask.astype(jnp.float32).reshape(B, 1, S)
    enc_pad = encoder_attention_mask.astype(jnp.float32).reshape(B, 1, Se)
    enc = encoder_hidden_states.astype(jnp.bfloat16)

    hidden = embed_ln_call(inputs_embeds, pos_embeds,
                           params["embed_ln_g"], params["embed_ln_b"], q_tile)

    # TODO(synk): on v5e/v6e (128 MiB VMEM) the per-layer calls could be fused into one to
    #             save two (B,S,D) activation round trips; kept split for v7x 64 MiB headroom.
    for lp in params["layers"]:
        ks, vs = kv_proj_call(hidden, lp["self"], kv_tile_dec)           # K/V projected once
        hidden = attn_ln_call(hidden, ks, vs, self_pad, lp["self"], True, H, q_tile)
        kc, vc = kv_proj_call(enc, lp["cross"], kv_tile_enc)
        hidden = attn_ln_call(hidden, kc, vc, enc_pad, lp["cross"], False, H, q_tile)
        hidden = ffn_ln_call(hidden, lp["ffn"], q_tile)
    # TODO(synk): use_cache / past_key_values (KV-cache) return path is not materialized;
    #             only the final hidden_states of the full-sequence forward is produced.
    return hidden


# ----------------------------- demo -----------------------------
if __name__ == "__main__":
    # lane-dense demo shapes (D, hd, S, Se multiples of 128), still small & fast
    B, S, Se = 2, 256, 256
    D, H, F = 256, 2, 512           # hd = 128
    VOCAB, PAD, MAX_POS = 64, 0, 512
    N_LAYERS = 2
    TQ, TKV = 128, 128              # grids: (B, S//TQ) = (2, 2)

    key = jax.random.PRNGKey(0)
    k_params, k_ids, k_enc = jax.random.split(key, 3)

    params = init_decoder_params(k_params, VOCAB, D, H, F, PAD, MAX_POS, N_LAYERS)

    input_ids = jax.random.randint(k_ids, (B, S), 1, VOCAB)
    attention_mask = jnp.ones((B, S), jnp.float32)
    encoder_hidden_states = jax.random.normal(k_enc, (B, Se, D), jnp.float32)
    encoder_attention_mask = jnp.ones((B, Se), jnp.float32).at[1, Se - 1].set(0.0)

    _ = _single_buffer_weights_supported()   # prime the Buffered(1) probe outside the model path

    out = transformer_decoder_forward(input_ids, attention_mask,
                                      encoder_hidden_states, encoder_attention_mask,
                                      params, q_tile=TQ, kv_tile=TKV)
    out = jax.block_until_ready(out)
    assert out.shape == (B, S, D)
    assert bool(jnp.all(jnp.isfinite(out.astype(jnp.float32))))
    print("KERNEL_OK")
</pallas_src>

<mosaic_0001>
module attributes {stable_mosaic.version = 11 : i64} {
  func.func @_k(%arg0: i32, %arg1: memref<8x128xf32, #tpu.memory_space<vmem>>, %arg2: memref<8x128xf32, #tpu.memory_space<vmem>>, %arg3: memref<8x128xf32, #tpu.memory_space<vmem>>) attributes {dimension_semantics = [#tpu.dimension_semantics<arbitrary>], iteration_bounds = array<i64: 2>, scalar_prefetch = 0 : i64, scratch_operands = 0 : i64, tpu.core_type = #tpu.core_type<tc>, window_params = [{transform_indices = @transform_0, window_bounds = array<i64: 8, 128>}, {pipeline_mode = #tpu.pipeline_mode<synchronous>, transform_indices = @transform_1, window_bounds = array<i64: 8, 128>}, {transform_indices = @transform_2, window_bounds = array<i64: 8, 128>}]} {
    %c0 = arith.constant 0 : index
    %c0_0 = arith.constant 0 : index
    %0 = vector.load %arg1[%c0, %c0_0] : memref<8x128xf32, #tpu.memory_space<vmem>>, vector<8x128xf32>
    %c0_1 = arith.constant 0 : index
    %c0_2 = arith.constant 0 : index
    %1 = vector.load %arg2[%c0_1, %c0_2] : memref<8x128xf32, #tpu.memory_space<vmem>>, vector<8x128xf32>
    %2 = arith.addf %0, %1 : vector<8x128xf32>
    %c0_3 = arith.constant 0 : index
    %c0_4 = arith.constant 0 : index
    %3 = vector.load %arg3[%c0_3, %c0_4] : memref<8x128xf32, #tpu.memory_space<vmem>>, vector<8x128xf32>
    tpu.vector_store %arg3[%c0_3, %c0_4], %2 {strides = array<i32>} : memref<8x128xf32, #tpu.memory_space<vmem>>, vector<8x128xf32>,
    return
  }
  func.func @transform_0(%arg0: i32) -> (i32, i32) {
    %c0_i32 = arith.constant 0 : i32
    %c0_i32_0 = arith.constant 0 : i32
    return %arg0, %c0_i32 : i32, i32
  }
  func.func @transform_1(%arg0: i32) -> (i32, i32) {
    %c0_i32 = arith.constant 0 : i32
    %c0_i32_0 = arith.constant 0 : i32
    %c0_i32_1 = arith.constant 0 : i32
    return %c0_i32, %c0_i32_0 : i32, i32
  }
  func.func @transform_2(%arg0: i32) -> (i32, i32) {
    %c0_i32 = arith.constant 0 : i32
    %c0_i32_0 = arith.constant 0 : i32
    return %arg0, %c0_i32 : i32, i32
  }
}

module attributes {stable_mosaic.version = 11 : i64} {
  func.func @embed_ln_kernel(%arg0: i32, %arg1: i32, %arg2: memref<1x128x256xbf16, #tpu.memory_space<vmem>>, %arg3: memref<128x256xbf16, #tpu.memory_space<vmem>>, %arg4: memref<1x256xf32, #tpu.memory_space<vmem>>, %arg5: memref<1x256xf32, #tpu.memory_space<vmem>>, %arg6: memref<1x128x256xbf16, #tpu.memory_space<vmem>>) attributes {dimension_semantics = [#tpu.dimension_semantics<parallel>, #tpu.dimension_semantics<parallel>], iteration_bounds = array<i64: 2, 2>, scalar_prefetch = 0 : i64, scratch_operands = 0 : i64, tpu.core_type = #tpu.core_type<tc>, window_params = [{transform_indices = @transform_0, window_bounds = array<i64: 1, 128, 256>}, {transform_indices = @transform_1, window_bounds = array<i64: 128, 256>}, {pipeline_mode = #tpu.pipeline_mode<synchronous>, transform_indices = @transform_2, window_bounds = array<i64: 1, 256>}, {pipeline_mode = #tpu.pipeline_mode<synchronous>, transform_indices = @transform_3, window_bounds = array<i64: 1, 256>}, {transform_indices = @transform_4, window_bounds = array<i64: 1, 128, 256>}]} {
    %c0 = arith.constant 0 : index
    %c0_0 = arith.constant 0 : index
    %c0_1 = arith.constant 0 : index
    %0 = vector.load %arg2[%c0, %c0_0, %c0_1] : memref<1x128x256xbf16, #tpu.memory_space<vmem>>, vector<1x128x256xbf16>
    %1 = vector.shape_cast %0 : vector<1x128x256xbf16> to vector<128x256xbf16>
    %2 = arith.extf %1 : vector<128x256xbf16> to vector<128x256xf32>
    %c0_2 = arith.constant 0 : index
    %c0_3 = arith.constant 0 : index
    %3 = vector.load %arg3[%c0_2, %c0_3] : memref<128x256xbf16, #tpu.memory_space<vmem>>, vector<128x256xbf16>
    %4 = arith.extf %3 : vector<128x256xbf16> to vector<128x256xf32>
    %5 = arith.addf %2, %4 : vector<128x256xf32>
    %c0_4 = arith.constant 0 : index
    %c0_5 = arith.constant 0 : index
    %6 = vector.load %arg4[%c0_4, %c0_5] : memref<1x256xf32, #tpu.memory_space<vmem>>, vector<1x256xf32>
    %c0_6 = arith.constant 0 : index
    %c0_7 = arith.constant 0 : index
    %7 = vector.load %arg5[%c0_6, %c0_7] : memref<1x256xf32, #tpu.memory_space<vmem>>, vector<1x256xf32>
    %cst = arith.constant dense<0.000000e+00> : vector<128xf32>
    %8 = vector.multi_reduction <add>, %5, %cst [1] : vector<128x256xf32> to vector<128xf32>
    %9 = vector.shape_cast %8 : vector<128xf32> to vector<128x1xf32>
    %cst_8 = arith.constant 2.560000e+02 : f32
    %10 = vector.broadcast %cst_8 : f32 to vector<128x1xf32>
    %11 = arith.divf %9, %10 : vector<128x1xf32>
    %12 = vector.broadcast %11 : vector<128x1xf32> to vector<128x256xf32>
    %13 = arith.subf %5, %12 : vector<128x256xf32>
    %14 = arith.mulf %13, %13 : vector<128x256xf32>
    %cst_9 = arith.constant dense<0.000000e+00> : vector<128xf32>
    %15 = vector.multi_reduction <add>, %14, %cst_9 [1] : vector<128x256xf32> to vector<128xf32>
    %16 = vector.shape_cast %15 : vector<128xf32> to vector<128x1xf32>
    %cst_10 = arith.constant 2.560000e+02 : f32
    %17 = vector.broadcast %cst_10 : f32 to vector<128x1xf32>
    %18 = arith.divf %16, %17 : vector<128x1xf32>
    %19 = vector.broadcast %11 : vector<128x1xf32> to vector<128x256xf32>
    %20 = arith.subf %5, %19 : vector<128x256xf32>
    %cst_11 = arith.constant 9.99999974E-6 : f32
    %21 = vector.broadcast %cst_11 : f32 to vector<128x1xf32>
    %22 = arith.addf %18, %21 : vector<128x1xf32>
    %23 = math.rsqrt %22 : vector<128x1xf32>
    %24 = vector.broadcast %23 : vector<128x1xf32> to vector<128x256xf32>
    %25 = arith.mulf %20, %24 : vector<128x256xf32>
    %26 = vector.broadcast %6 : vector<1x256xf32> to vector<128x256xf32>
    %27 = arith.mulf %25, %26 : vector<128x256xf32>
    %28 = vector.broadcast %7 : vector<1x256xf32> to vector<128x256xf32>
    %29 = arith.addf %27, %28 : vector<128x256xf32>
    %30 = arith.truncf %29 : vector<128x256xf32> to vector<128x256xbf16>
    %c0_12 = arith.constant 0 : index
    %c0_13 = arith.constant 0 : index
    %c0_14 = arith.constant 0 : index
    %31 = vector.load %arg6[%c0_12, %c0_13, %c0_14] : memref<1x128x256xbf16, #tpu.memory_space<vmem>>, vector<1x128x256xbf16>
    %32 = vector.shape_cast %31 : vector<1x128x256xbf16> to vector<128x256xbf16>
    %33 = vector.shape_cast %30 : vector<128x256xbf16> to vector<1x128x256xbf16>
    tpu.vector_store %arg6[%c0_12, %c0_13, %c0_14], %33 {strides = array<i32>} : memref<1x128x256xbf16, #tpu.memory_space<vmem>>, vector<1x128x256xbf16>,
    return
  }
  func.func @transform_0(%arg0: i32, %arg1: i32) -> (i32, i32, i32) {
    %c0_i32 = arith.constant 0 : i32
    %c0_i32_0 = arith.constant 0 : i32
    return %arg0, %arg1, %c0_i32 : i32, i32, i32
  }
  func.func @transform_1(%arg0: i32, %arg1: i32) -> (i32, i32) {
    %c0_i32 = arith.constant 0 : i32
    %c0_i32_0 = arith.constant 0 : i32
    return %arg1, %c0_i32 : i32, i32
  }
  func.func @transform_2(%arg0: i32, %arg1: i32) -> (i32, i32) {
    %c0_i32 = arith.constant 0 : i32
    %c0_i32_0 = arith.constant 0 : i32
    %c0_i32_1 = arith.constant 0 : i32
    return %c0_i32, %c0_i32_0 : i32, i32
  }
  func.func @transform_3(%arg0: i32, %arg1: i32) -> (i32, i32) {
    %c0_i32 = arith.constant 0 : i32
    %c0_i32_0 = arith.constant 0 : i32
    %c0_i32_1 = arith.constant 0 : i32
    return %c0_i32, %c0_i32_0 : i32, i32
  }
  func.func @transform_4(%arg0: i32, %arg1: i32) -> (i32, i32, i32) {
    %c0_i32 = arith.constant 0 : i32
    %c0_i32_0 = arith.constant 0 : i32
    return %arg0, %arg1, %c0_i32 : i32, i32, i32
  }
}

</mosaic_0001>

<llo_original>
// kernel: tpu_custom_call.1
$region0: #{tpu_custom_call.1}
  #allocation0 [shape = 'u32[]', space=smem, size = 0x4, offset = 0x4, fixed_abs, tag = 'smem constant byte address 0x4 - core index']
  #allocation1 [shape = 'u32[72,128]{1,0:T(1,128)}', space=vmem, size = 0x9000, scoped, tag = 'internal scratch']
  %s0 = inlined_call_operand.hbm [shape: f32[16,128], index: 0, kind: input, shape index: {}]
  %s1 = inlined_call_operand.hbm [shape: f32[8,128], index: 1, kind: input, shape index: {}]
  %s2 = inlined_call_operand.hbm [shape: f32[16,128], index: 2, kind: output, shape index: {}]
  %s3 = sld [smem:[#allocation0]]
  $region49: #{tpu_custom_call.1} parent=0
    _
  %s5 = ssub.s32 1, %s3
  %s6 = scalar_select 0, %s5, %s3
  $region1: #{tpu_custom_call.1} parent=0
    #allocation2 [shape = 'u8[8192]{0}', space=vmem, size = 0x2000, scoped, tag = 'input window, operand 0']
    #allocation3 [shape = 's32[2]{0}', space=sflag, size = 0x8, scoped, tag = 'scoped memory for tpu_custom_call.1']
    #allocation4 [shape = 's32[2]{0}', space=sflag, size = 0x8, scoped, tag = 'scoped memory for tpu_custom_call.1']
    #allocation5 [shape = 'u8[4096]{0}', space=vmem, size = 0x1000, scoped, tag = 'input window, operand 1, single buffered']
    #allocation6 [shape = 's32[1]{0}', space=sflag, size = 0x4, scoped, tag = 'scoped memory for tpu_custom_call.1']
    #allocation7 [shape = 'u8[8192]{0}', space=vmem, size = 0x2000, scoped, tag = 'output window, operand 0']
    %7 = vsyncpa [#allocation3], 0
    %s8 = scalar_lea.sflag [#allocation3], 1
    %9 = vsyncpa %s8, 0
    %10 = vsyncpa [#allocation6], 0
    %11 = vsyncpa [#allocation4], 0
    %s12 = scalar_lea.sflag [#allocation4], 1
    %13 = vsyncpa %s12, 0
    loop: start=0, step=1, limit=4
    $region2: #{tpu_custom_call.1} parent=1 // loop_pre_header
      _
    $region3: #{tpu_custom_call.1} parent=1 // loop_header
      %s15 = sphi 0, %s19
      %p16 = scmp.ge.s32.totalorder %s15, 4
      %s25 = sphi 0, %s27
      %s28 = sphi 0, %s25
      %s29 = sphi 0, %s28
      %s45 = sphi 0, %s29
      %s49 = sphi 0, %s49
      %s51 = sphi 0, %s49
      %s52 = sphi 0, %s51
      %s66 = sphi 0, %s52
      %s72 = sphi 0, %s74
      %s75 = sphi 0, %s72
      %s76 = sphi 0, %s75
      %s92 = sphi 0, %s76
    $region4: #{tpu_custom_call.1} parent=1 // loop_header_branch
      %18 = sbr.rel (%p16) target = $region8
    $region5: #{tpu_custom_call.1} parent=1 // loop_body
      %s20 = ssub.s32 %s15, 1
      %s21 = ssub.s32 %s15, 2
      %s22 = sadd.s32 %s15, 1
      %s23 = ssub.s32 %s15, %s22
      %p24 = scmp.eq.s32.totalorder %s23, 0
      %s26 = sadd.s32 %s25, 1
      %s27 = scalar_select %p24, %s25, %s26
      %p30 = pneg %p24
      %p31 = scmp.eq.s32.totalorder %s15, 1
      %p32 = por %p30, %p31
      %p33 = scmp.ne.s32.totalorder %s25, %s28
      %p34 = scmp.eq.s32.totalorder %s15, 0
      %p35 = por %p33, %p34
      %p36 = scmp.ne.s32.totalorder %s25, %s28
      %p37 = scmp.eq.s32.totalorder %s20, 1
      %p38 = por %p36, %p37
      %p39 = scmp.ne.s32.totalorder %s28, %s29
      %p40 = scmp.eq.s32.totalorder %s20, 0
      %p41 = por %p39, %p40
      %p42 = scmp.ne.s32.totalorder %s28, %s29
      %p43 = scmp.eq.s32.totalorder %s21, 1
      %p44 = por %p42, %p43
      %p46 = scmp.ne.s32.totalorder %s29, %s45
      %p47 = scmp.eq.s32.totalorder %s21, 0
      %p48 = por %p46, %p47
      %s50 = sadd.s32 %s49, 1
      %p53 = scmp.eq.s32.totalorder %s15, 1
      %p54 = scmp.ne.s32.totalorder %s49, %s51
      %p55 = scmp.eq.s32.totalorder %s15, 0
      %p56 = por %p54, %p55
      %p57 = scmp.ne.s32.totalorder %s49, %s51
      %p58 = scmp.eq.s32.totalorder %s20, 1
      %p59 = por %p57, %p58
      %p60 = scmp.ne.s32.totalorder %s51, %s52
      %p61 = scmp.eq.s32.totalorder %s20, 0
      %p62 = por %p60, %p61
      %p63 = scmp.ne.s32.totalorder %s51, %s52
      %p64 = scmp.eq.s32.totalorder %s21, 1
      %p65 = por %p63, %p64
      %p67 = scmp.ne.s32.totalorder %s52, %s66
      %p68 = scmp.eq.s32.totalorder %s21, 0
      %p69 = por %p67, %p68
      %s70 = ssub.s32 %s15, %s22
      %p71 = scmp.eq.s32.totalorder %s70, 0
      %s73 = sadd.s32 %s72, 1
      %s74 = scalar_select %p71, %s72, %s73
      %p77 = pneg %p71
      %p78 = scmp.eq.s32.totalorder %s15, 1
      %p79 = por %p77, %p78
      %p80 = scmp.ne.s32.totalorder %s72, %s75
      %p81 = scmp.eq.s32.totalorder %s15, 0
      %p82 = por %p80, %p81
      %p83 = scmp.ne.s32.totalorder %s72, %s75
      %p84 = scmp.eq.s32.totalorder %s20, 1
      %p85 = por %p83, %p84
      %p86 = scmp.ne.s32.totalorder %s75, %s76
      %p87 = scmp.eq.s32.totalorder %s20, 0
      %p88 = por %p86, %p87
      %p89 = scmp.ne.s32.totalorder %s75, %s76
      %p90 = scmp.eq.s32.totalorder %s21, 1
      %p91 = por %p89, %p90
      %p93 = scmp.ne.s32.totalorder %s76, %s92
      %p94 = scmp.eq.s32.totalorder %s21, 0
      %p95 = por %p93, %p94
      %p96 = scmp.le.s32.totalorder 1, %s15
      %p97 = scmp.lt.s32.totalorder %s15, 3
      %p98 = pnand %p96, %p97
      %p99 = pneg %p98
      // Predicated region
      $region9: #{tpu_custom_call.1} parent=5 // pred_check
        _
      $region10: #{tpu_custom_call.1} parent=5 // pred_check_branch
        %101 = sbr.rel (%p98) target = $region12
      $region11: #{tpu_custom_call.1} parent=5 // pred_region
        %s102 = ssub.s32 %s15, 1
        // Predicated region
        $region13: #{tpu_custom_call.1} parent=11 // pred_check
          %p103 = pneg %p62
        $region14: #{tpu_custom_call.1} parent=11 // pred_check_branch
          %105 = sbr.rel (%p103) target = $region16
        $region15: #{tpu_custom_call.1} parent=11 // pred_region
          %107 = vsyncadd [#allocation6], 0
          %s109 = sshll.u32 %s1, 4
          %s110 = int_to_ptr.hbm [resolvable:$true] %s109
          %s111 = sshll.u32 [#allocation5], 4
          %s112 = int_to_ptr.vmem [resolvable:$true] %s111
          %114 = dma.hbm_to_vmem [thread:$0]  %s110, 128, %s112, [#allocation6]
        $region16: #{tpu_custom_call.1} parent=11 // pred_fallthru
          _
      $region12: #{tpu_custom_call.1} parent=5 // pred_fallthru
        _
      %p115 = scmp.lt.s32.totalorder %s15, 2
      // Predicated region
      $region17: #{tpu_custom_call.1} parent=5 // pred_check
        %p116 = pneg %p115
      $region18: #{tpu_custom_call.1} parent=5 // pred_check_branch
        %118 = sbr.rel (%p116) target = $region20
      $region19: #{tpu_custom_call.1} parent=5 // pred_region
        // Predicated region
        $region21: #{tpu_custom_call.1} parent=19 // pred_check
          %p119 = pneg %p35
        $region22: #{tpu_custom_call.1} parent=19 // pred_check_branch
          %121 = sbr.rel (%p119) target = $region24
        $region23: #{tpu_custom_call.1} parent=19 // pred_region
          %s122 = sand.u32 %s25, 1
          %s123 = scalar_lea.sflag [#allocation3], %s122
          %s124 = sand.u32 %s25, 1
          %s125 = smul.addr %s124, 8
          %s126 = scalar_lea.vmem [#allocation2], %s125
          %128 = vsyncadd %s123, 0
          %s129 = smul.addr %s15, 8
          %s130 = scalar_lea.hbm %s0, %s129
          %s132 = sshll.u32 %s130, 4
          %s133 = int_to_ptr.hbm [resolvable:$true] %s132
          %s134 = sshll.u32 %s126, 4
          %s135 = int_to_ptr.vmem [resolvable:$true] %s134
          %137 = dma.hbm_to_vmem [thread:$0]  %s133, 128, %s135, %s123
        $region24: #{tpu_custom_call.1} parent=19 // pred_fallthru
          _
      $region20: #{tpu_custom_call.1} parent=5 // pred_fallthru
        _
      %p138 = scmp.le.s32.totalorder 1, %s15
      %p139 = scmp.lt.s32.totalorder %s15, 3
      %p140 = pnand %p138, %p139
      %p141 = pneg %p140
      // Predicated region
      $region25: #{tpu_custom_call.1} parent=5 // pred_check
        _
      $region26: #{tpu_custom_call.1} parent=5 // pred_check_branch
        %143 = sbr.rel (%p140) target = $region28
      $region27: #{tpu_custom_call.1} parent=5 // pred_region
        %s144 = ssub.s32 %s15, 1
        %s145 = sand.u32 %s28, 1
        %s146 = scalar_lea.sflag [#allocation3], %s145
        %s147 = sand.u32 %s28, 1
        %s148 = smul.addr %s147, 8
        %s149 = scalar_lea.vmem [#allocation2], %s148
        // Predicated region
        $region29: #{tpu_custom_call.1} parent=27 // pred_check
          %p150 = pneg %p41
        $region30: #{tpu_custom_call.1} parent=27 // pred_check_branch
          %152 = sbr.rel (%p150) target = $region32
        $region31: #{tpu_custom_call.1} parent=27 // pred_region
          %154 = dma.done %s146, 128
        $region32: #{tpu_custom_call.1} parent=27 // pred_fallthru
          _
        // Predicated region
        $region33: #{tpu_custom_call.1} parent=27 // pred_check
          %p155 = pneg %p62
        $region34: #{tpu_custom_call.1} parent=27 // pred_check_branch
          %157 = sbr.rel (%p155) target = $region36
        $region35: #{tpu_custom_call.1} parent=27 // pred_region
          %159 = dma.done [#allocation6], 128
        $region36: #{tpu_custom_call.1} parent=27 // pred_fallthru
          _
        %s160 = sand.u32 %s28, 1
        %s161 = scalar_lea.sflag [#allocation3], %s160
        %s162 = sand.u32 %s28, 1
        %s163 = smul.addr %s162, 8
        %s164 = scalar_lea.vmem [#allocation2], %s163
        %p165 = pneg %p41
        %p166 = pneg %p38
        %p167 = pneg %p62
        %p168 = pneg %p59
        %p169 = pneg %p88
        %p170 = pneg %p85
        %s171 = sand.u32 %s75, 1
        %s172 = scalar_lea.sflag [#allocation4], %s171
        %s173 = sand.u32 %s75, 1
        %s174 = smul.addr %s173, 8
        %s175 = scalar_lea.vmem [#allocation7], %s174
        %v176 = vld [vmem:[%s149] sm:$0xff]
        %v177 = vld [vmem:[#allocation5] sm:$0xff]
        %v178 = vadd.f32 %v176, %v177
        %179 = vst [vmem:[%s175] sm:$0xff] %v178
        %s180 = sand.u32 %s75, 1
        %s181 = scalar_lea.sflag [#allocation4], %s180
        %s182 = sand.u32 %s75, 1
        %s183 = smul.addr %s182, 8
        %s184 = scalar_lea.vmem [#allocation7], %s183
        // Predicated region
        $region37: #{tpu_custom_call.1} parent=27 // pred_check
          %p185 = pneg %p85
        $region38: #{tpu_custom_call.1} parent=27 // pred_check_branch
          %187 = sbr.rel (%p185) target = $region40
        $region39: #{tpu_custom_call.1} parent=27 // pred_region
          %189 = vsyncadd %s181, 0
          %s190 = smul.addr %s20, 8
          %s191 = scalar_lea.hbm %s2, %s190
          %s193 = sshll.u32 %s184, 4
          %s194 = int_to_ptr.vmem [resolvable:$true] %s193
          %s195 = sshll.u32 %s191, 4
          %s196 = int_to_ptr.hbm [resolvable:$true] %s195
          %198 = dma.vmem_to_hbm [thread:$0]  %s194, 128, %s196, %s181
        $region40: #{tpu_custom_call.1} parent=27 // pred_fallthru
          _
      $region28: #{tpu_custom_call.1} parent=5 // pred_fallthru
        _
      %p199 = scmp.le.s32.totalorder 2, %s15
      // Predicated region
      $region41: #{tpu_custom_call.1} parent=5 // pred_check
        %p200 = pneg %p199
      $region42: #{tpu_custom_call.1} parent=5 // pred_check_branch
        %202 = sbr.rel (%p200) target = $region44
      $region43: #{tpu_custom_call.1} parent=5 // pred_region
        %s203 = ssub.s32 %s15, 2
        // Predicated region
        $region45: #{tpu_custom_call.1} parent=43 // pred_check
          %p204 = pneg %p91
        $region46: #{tpu_custom_call.1} parent=43 // pred_check_branch
          %206 = sbr.rel (%p204) target = $region48
        $region47: #{tpu_custom_call.1} parent=43 // pred_region
          %s207 = sand.u32 %s76, 1
          %s208 = scalar_lea.sflag [#allocation4], %s207
          %s209 = sand.u32 %s76, 1
          %s210 = smul.addr %s209, 8
          %s211 = scalar_lea.vmem [#allocation7], %s210
          %213 = dma.done %s208, 128
        $region48: #{tpu_custom_call.1} parent=43 // pred_fallthru
          _
      $region44: #{tpu_custom_call.1} parent=5 // pred_fallthru
        _
    $region6: #{tpu_custom_call.1} parent=1 // loop_footer
      %s19 = sadd.s32 1, %s15
    $region7: #{tpu_custom_call.1} parent=1 // loop_footer_branch
      %14 = sbr.rel target = $region3
    $region8: #{tpu_custom_call.1} parent=1 // loop_exit
      _
    %214 = vsyncpa [#allocation3], 1
    %s215 = scalar_lea.sflag [#allocation3], 1
    %216 = vsyncpa %s215, 1
    %217 = vsyncpa [#allocation6], 1
    %218 = vsyncpa [#allocation4], 1
    %s219 = scalar_lea.sflag [#allocation4], 1
    %220 = vsyncpa %s219, 1

// kernel: tpu_custom_call.1
$region0: #{tpu_custom_call.1}
  #allocation0 [shape = 'u32[]', space=smem, size = 0x4, offset = 0x4, fixed_abs, tag = 'smem constant byte address 0x4 - core index']
  #allocation1 [shape = 'u32[72,128]{1,0:T(1,128)}', space=vmem, size = 0x9000, scoped, tag = 'internal scratch']
  %s0 = inlined_call_operand.hbm [shape: bf16[2,256,256], index: 0, kind: input, shape index: {}]
  %s1 = inlined_call_operand.hbm [shape: bf16[256,256], index: 1, kind: input, shape index: {}]
  %s2 = inlined_call_operand.hbm [shape: f32[1,256], index: 2, kind: input, shape index: {}]
  %s3 = inlined_call_operand.vmem [shape: f32[1,256], index: 3, kind: input, shape index: {}]
  %s4 = inlined_call_operand.hbm [shape: bf16[2,256,256], index: 4, kind: output, shape index: {}]
  %s5 = sld [smem:[#allocation0]]
  $region61: #{tpu_custom_call.1} parent=0
    _
  %s7 = ssub.s32 1, %s5
  %s8 = scalar_select 0, %s7, %s5
  $region1: #{tpu_custom_call.1} parent=0
    #allocation2 [shape = 'u8[131072]{0}', space=vmem, size = 0x20000, scoped, tag = 'input window, operand 0']
    #allocation3 [shape = 's32[2]{0}', space=sflag, size = 0x8, scoped, tag = 'scoped memory for tpu_custom_call.1']
    #allocation4 [shape = 's32[2]{0}', space=sflag, size = 0x8, scoped, tag = 'scoped memory for tpu_custom_call.1']
    #allocation5 [shape = 'u8[131072]{0}', space=vmem, size = 0x20000, scoped, tag = 'input window, operand 1']
    #allocation6 [shape = 's32[2]{0}', space=sflag, size = 0x8, scoped, tag = 'scoped memory for tpu_custom_call.1']
    #allocation7 [shape = 'u8[1024]{0}', space=vmem, size = 0x400, scoped, tag = 'input window, operand 2, single buffered']
    #allocation8 [shape = 'u8[131072]{0}', space=vmem, size = 0x20000, scoped, tag = 'output window, operand 0']
    %9 = vsyncpa [#allocation3], 0
    %s10 = scalar_lea.sflag [#allocation3], 1
    %11 = vsyncpa %s10, 0
    %12 = vsyncpa [#allocation6], 0
    %s13 = scalar_lea.sflag [#allocation6], 1
    %14 = vsyncpa %s13, 0
    %15 = vsyncpa [#allocation4], 0
    %s16 = scalar_lea.sflag [#allocation4], 1
    %17 = vsyncpa %s16, 0
    loop: start=0, step=1, limit=6
    $region2: #{tpu_custom_call.1} parent=1 // loop_pre_header
      _
    $region3: #{tpu_custom_call.1} parent=1 // loop_header
      %s19 = sphi 0, %s23
      %p20 = scmp.ge.s32.totalorder %s19, 6
      %s26 = sphi 0, %s38
      %s27 = sphi 0, %s34
      %s28 = sphi 0, %s26
      %s29 = sphi 0, %s27
      %s30 = sphi 0, %s28
      %s31 = sphi 0, %s29
      %s43 = sphi 0, %s45
      %s46 = sphi 0, %s43
      %s47 = sphi 0, %s46
      %s63 = sphi 0, %s47
      %s69 = sphi 0, %s71
      %s72 = sphi 0, %s69
      %s73 = sphi 0, %s72
      %s89 = sphi 0, %s73
      %s93 = sphi 0, %s93
      %s95 = sphi 0, %s93
      %s96 = sphi 0, %s95
      %s110 = sphi 0, %s96
      %s114 = sphi 0, %s114
      %s116 = sphi 0, %s114
      %s117 = sphi 0, %s116
      %s131 = sphi 0, %s117
      %s139 = sphi 0, %s141
      %s142 = sphi 0, %s139
      %s143 = sphi 0, %s142
      %s159 = sphi 0, %s143
    $region4: #{tpu_custom_call.1} parent=1 // loop_header_branch
      %22 = sbr.rel (%p20) target = $region8
    $region5: #{tpu_custom_call.1} parent=1 // loop_body
      %s24 = ssub.s32 %s19, 1
      %s25 = ssub.s32 %s19, 2
      %s32 = sadd.s32 1, %s27
      %p33 = scmp.ge.s32.totalorder %s32, 2
      %s34 = scalar_select %p33, 0, %s32
      %s35 = sadd.s32 1, %s26
      %s36 = scalar_select %p33, %s35, %s26
      %p37 = scmp.ge.s32.totalorder %s36, 2
      %s38 = scalar_select %p37, 0, %s36
      %s39 = ssub.s32 %s26, %s38
      %s40 = ssub.s32 %s27, %s34
      %s41 = sor.u32 %s39, %s40
      %p42 = scmp.eq.s32.totalorder %s41, 0
      %s44 = sadd.s32 %s43, 1
      %s45 = scalar_select %p42, %s43, %s44
      %p48 = pneg %p42
      %p49 = scmp.eq.s32.totalorder %s19, 3
      %p50 = por %p48, %p49
      %p51 = scmp.ne.s32.totalorder %s43, %s46
      %p52 = scmp.eq.s32.totalorder %s19, 0
      %p53 = por %p51, %p52
      %p54 = scmp.ne.s32.totalorder %s43, %s46
      %p55 = scmp.eq.s32.totalorder %s24, 3
      %p56 = por %p54, %p55
      %p57 = scmp.ne.s32.totalorder %s46, %s47
      %p58 = scmp.eq.s32.totalorder %s24, 0
      %p59 = por %p57, %p58
      %p60 = scmp.ne.s32.totalorder %s46, %s47
      %p61 = scmp.eq.s32.totalorder %s25, 3
      %p62 = por %p60, %p61
      %p64 = scmp.ne.s32.totalorder %s47, %s63
      %p65 = scmp.eq.s32.totalorder %s25, 0
      %p66 = por %p64, %p65
      %s67 = ssub.s32 %s27, %s34
      %p68 = scmp.eq.s32.totalorder %s67, 0
      %s70 = sadd.s32 %s69, 1
      %s71 = scalar_select %p68, %s69, %s70
      %p74 = pneg %p68
      %p75 = scmp.eq.s32.totalorder %s19, 3
      %p76 = por %p74, %p75
      %p77 = scmp.ne.s32.totalorder %s69, %s72
      %p78 = scmp.eq.s32.totalorder %s19, 0
      %p79 = por %p77, %p78
      %p80 = scmp.ne.s32.totalorder %s69, %s72
      %p81 = scmp.eq.s32.totalorder %s24, 3
      %p82 = por %p80, %p81
      %p83 = scmp.ne.s32.totalorder %s72, %s73
      %p84 = scmp.eq.s32.totalorder %s24, 0
      %p85 = por %p83, %p84
      %p86 = scmp.ne.s32.totalorder %s72, %s73
      %p87 = scmp.eq.s32.totalorder %s25, 3
      %p88 = por %p86, %p87
      %p90 = scmp.ne.s32.totalorder %s73, %s89
      %p91 = scmp.eq.s32.totalorder %s25, 0
      %p92 = por %p90, %p91
      %s94 = sadd.s32 %s93, 1
      %p97 = scmp.eq.s32.totalorder %s19, 3
      %p98 = scmp.ne.s32.totalorder %s93, %s95
      %p99 = scmp.eq.s32.totalorder %s19, 0
      %p100 = por %p98, %p99
      %p101 = scmp.ne.s32.totalorder %s93, %s95
      %p102 = scmp.eq.s32.totalorder %s24, 3
      %p103 = por %p101, %p102
      %p104 = scmp.ne.s32.totalorder %s95, %s96
      %p105 = scmp.eq.s32.totalorder %s24, 0
      %p106 = por %p104, %p105
      %p107 = scmp.ne.s32.totalorder %s95, %s96
      %p108 = scmp.eq.s32.totalorder %s25, 3
      %p109 = por %p107, %p108
      %p111 = scmp.ne.s32.totalorder %s96, %s110
      %p112 = scmp.eq.s32.totalorder %s25, 0
      %p113 = por %p111, %p112
      %s115 = sadd.s32 %s114, 1
      %p118 = scmp.eq.s32.totalorder %s19, 3
      %p119 = scmp.ne.s32.totalorder %s114, %s116
      %p120 = scmp.eq.s32.totalorder %s19, 0
      %p121 = por %p119, %p120
      %p122 = scmp.ne.s32.totalorder %s114, %s116
      %p123 = scmp.eq.s32.totalorder %s24, 3
      %p124 = por %p122, %p123
      %p125 = scmp.ne.s32.totalorder %s116, %s117
      %p126 = scmp.eq.s32.totalorder %s24, 0
      %p127 = por %p125, %p126
      %p128 = scmp.ne.s32.totalorder %s116, %s117
      %p129 = scmp.eq.s32.totalorder %s25, 3
      %p130 = por %p128, %p129
      %p132 = scmp.ne.s32.totalorder %s117, %s131
      %p133 = scmp.eq.s32.totalorder %s25, 0
      %p134 = por %p132, %p133
      %s135 = ssub.s32 %s26, %s38
      %s136 = ssub.s32 %s27, %s34
      %s137 = sor.u32 %s135, %s136
      %p138 = scmp.eq.s32.totalorder %s137, 0
      %s140 = sadd.s32 %s139, 1
      %s141 = scalar_select %p138, %s139, %s140
      %p144 = pneg %p138
      %p145 = scmp.eq.s32.totalorder %s19, 3
      %p146 = por %p144, %p145
      %p147 = scmp.ne.s32.totalorder %s139, %s142
      %p148 = scmp.eq.s32.totalorder %s19, 0
      %p149 = por %p147, %p148
      %p150 = scmp.ne.s32.totalorder %s139, %s142
      %p151 = scmp.eq.s32.totalorder %s24, 3
      %p152 = por %p150, %p151
      %p153 = scmp.ne.s32.totalorder %s142, %s143
      %p154 = scmp.eq.s32.totalorder %s24, 0
      %p155 = por %p153, %p154
      %p156 = scmp.ne.s32.totalorder %s142, %s143
      %p157 = scmp.eq.s32.totalorder %s25, 3
      %p158 = por %p156, %p157
      %p160 = scmp.ne.s32.totalorder %s143, %s159
      %p161 = scmp.eq.s32.totalorder %s25, 0
      %p162 = por %p160, %p161
      %p163 = scmp.le.s32.totalorder 1, %s19
      %p164 = scmp.lt.s32.totalorder %s19, 5
      %p165 = pnand %p163, %p164
      %p166 = pneg %p165
      // Predicated region
      $region9: #{tpu_custom_call.1} parent=5 // pred_check
        _
      $region10: #{tpu_custom_call.1} parent=5 // pred_check_branch
        %168 = sbr.rel (%p165) target = $region12
      $region11: #{tpu_custom_call.1} parent=5 // pred_region
        %s169 = ssub.s32 %s19, 1
        // Predicated region
        $region13: #{tpu_custom_call.1} parent=11 // pred_check
          %p170 = pneg %p106
        $region14: #{tpu_custom_call.1} parent=11 // pred_check_branch
          %172 = sbr.rel (%p170) target = $region16
        $region15: #{tpu_custom_call.1} parent=11 // pred_region
          %174 = vsyncadd [#allocation6], 0
          %s176 = sshll.u32 %s2, 4
          %s177 = int_to_ptr.hbm [resolvable:$true] %s176
          %s178 = sshll.u32 [#allocation7], 4
          %s179 = int_to_ptr.vmem [resolvable:$true] %s178
          %181 = dma.hbm_to_vmem [thread:$0]  %s177, 32, %s179, [#allocation6]
        $region16: #{tpu_custom_call.1} parent=11 // pred_fallthru
          _
        // Predicated region
        $region17: #{tpu_custom_call.1} parent=11 // pred_check
          %p182 = pneg %p127
        $region18: #{tpu_custom_call.1} parent=11 // pred_check_branch
          %184 = sbr.rel (%p182) target = $region20
        $region19: #{tpu_custom_call.1} parent=11 // pred_region
          _
        $region20: #{tpu_custom_call.1} parent=11 // pred_fallthru
          _
      $region12: #{tpu_custom_call.1} parent=5 // pred_fallthru
        _
      %p185 = scmp.lt.s32.totalorder %s19, 4
      // Predicated region
      $region21: #{tpu_custom_call.1} parent=5 // pred_check
        %p186 = pneg %p185
      $region22: #{tpu_custom_call.1} parent=5 // pred_check_branch
        %188 = sbr.rel (%p186) target = $region24
      $region23: #{tpu_custom_call.1} parent=5 // pred_region
        // Predicated region
        $region25: #{tpu_custom_call.1} parent=23 // pred_check
          %p189 = pneg %p53
        $region26: #{tpu_custom_call.1} parent=23 // pred_check_branch
          %191 = sbr.rel (%p189) target = $region28
        $region27: #{tpu_custom_call.1} parent=23 // pred_region
          %s192 = sand.u32 %s43, 1
          %s193 = scalar_lea.sflag [#allocation3], %s192
          %s194 = sand.u32 %s43, 1
          %s195 = smul.addr %s194, 128
          %s196 = scalar_lea.vmem [#allocation2], %s195
          %s197 = smul.u32 16, %s27
          %199 = vsyncadd %s193, 0
          %s200 = smul.addr %s197, 2
          %s201 = smul.addr %s26, 64
          %s202 = sadd.s32 %s200, %s201
          %s203 = smul.addr %s202, 4
          %s204 = scalar_lea.hbm %s0, %s203
          %s205 = sshll.u32 %s204, 4
          %s206 = int_to_ptr.hbm [resolvable:$true] %s205
          %s207 = sshll.u32 %s196, 4
          %s208 = int_to_ptr.vmem [resolvable:$true] %s207
          %213 = dma.hbm_to_vmem [thread:$0]  %s206, 2048, %s208, %s193, 128, 128, 8
        $region28: #{tpu_custom_call.1} parent=23 // pred_fallthru
          _
        // Predicated region
        $region29: #{tpu_custom_call.1} parent=23 // pred_check
          %p214 = pneg %p79
        $region30: #{tpu_custom_call.1} parent=23 // pred_check_branch
          %216 = sbr.rel (%p214) target = $region32
        $region31: #{tpu_custom_call.1} parent=23 // pred_region
          %s217 = sand.u32 %s19, 1
          %s218 = scalar_lea.sflag [#allocation6], %s217
          %s219 = sand.u32 %s69, 1
          %s220 = smul.addr %s219, 128
          %s221 = scalar_lea.vmem [#allocation5], %s220
          %s222 = smul.u32 16, %s27
          %224 = vsyncadd %s218, 0
          %s225 = smul.addr %s222, 2
          %s226 = smul.addr %s225, 4
          %s227 = scalar_lea.hbm %s1, %s226
          %s228 = sshll.u32 %s227, 4
          %s229 = int_to_ptr.hbm [resolvable:$true] %s228
          %s230 = sshll.u32 %s221, 4
          %s231 = int_to_ptr.vmem [resolvable:$true] %s230
          %236 = dma.hbm_to_vmem [thread:$0]  %s229, 2048, %s231, %s218, 128, 128, 8
        $region32: #{tpu_custom_call.1} parent=23 // pred_fallthru
          _
      $region24: #{tpu_custom_call.1} parent=5 // pred_fallthru
        _
      %p237 = scmp.le.s32.totalorder 1, %s19
      %p238 = scmp.lt.s32.totalorder %s19, 5
      %p239 = pnand %p237, %p238
      %p240 = pneg %p239
      // Predicated region
      $region33: #{tpu_custom_call.1} parent=5 // pred_check
        _
      $region34: #{tpu_custom_call.1} parent=5 // pred_check_branch
        %242 = sbr.rel (%p239) target = $region36
      $region35: #{tpu_custom_call.1} parent=5 // pred_region
        %s243 = ssub.s32 %s19, 1
        %s244 = sand.u32 %s46, 1
        %s245 = scalar_lea.sflag [#allocation3], %s244
        %s246 = sand.u32 %s46, 1
        %s247 = smul.addr %s246, 128
        %s248 = scalar_lea.vmem [#allocation2], %s247
        // Predicated region
        $region37: #{tpu_custom_call.1} parent=35 // pred_check
          %p249 = pneg %p59
        $region38: #{tpu_custom_call.1} parent=35 // pred_check_branch
          %251 = sbr.rel (%p249) target = $region40
        $region39: #{tpu_custom_call.1} parent=35 // pred_region
          %253 = dma.done %s245, 2048
        $region40: #{tpu_custom_call.1} parent=35 // pred_fallthru
          _
        %s254 = sand.u32 %s24, 1
        %s255 = scalar_lea.sflag [#allocation6], %s254
        %s256 = sand.u32 %s72, 1
        %s257 = smul.addr %s256, 128
        %s258 = scalar_lea.vmem [#allocation5], %s257
        // Predicated region
        $region41: #{tpu_custom_call.1} parent=35 // pred_check
          %p259 = pneg %p85
        $region42: #{tpu_custom_call.1} parent=35 // pred_check_branch
          %261 = sbr.rel (%p259) target = $region44
        $region43: #{tpu_custom_call.1} parent=35 // pred_region
          %263 = dma.done %s255, 2048
        $region44: #{tpu_custom_call.1} parent=35 // pred_fallthru
          _
        // Predicated region
        $region45: #{tpu_custom_call.1} parent=35 // pred_check
          %p264 = pneg %p106
        $region46: #{tpu_custom_call.1} parent=35 // pred_check_branch
          %266 = sbr.rel (%p264) target = $region48
        $region47: #{tpu_custom_call.1} parent=35 // pred_region
          %268 = dma.done [#allocation6], 32
        $region48: #{tpu_custom_call.1} parent=35 // pred_fallthru
          _
        %s269 = sand.u32 %s46, 1
        %s270 = scalar_lea.sflag [#allocation3], %s269
        %s271 = sand.u32 %s46, 1
        %s272 = smul.addr %s271, 128
        %s273 = scalar_lea.vmem [#allocation2], %s272
        %p274 = pneg %p59
        %p275 = pneg %p56
        %s276 = sand.u32 %s24, 1
        %s277 = scalar_lea.sflag [#allocation6], %s276
        %s278 = sand.u32 %s72, 1
        %s279 = smul.addr %s278, 128
        %s280 = scalar_lea.vmem [#allocation5], %s279
        %p281 = pneg %p85
        %p282 = pneg %p82
        %p283 = pneg %p106
        %p284 = pneg %p103
        %p285 = pneg %p127
        %p286 = pneg %p124
        %p287 = pneg %p155
        %p288 = pneg %p152
        %s289 = sand.u32 %s142, 1
        %s290 = scalar_lea.sflag [#allocation4], %s289
        %s291 = sand.u32 %s142, 1
        %s292 = smul.addr %s291, 128
        %s293 = scalar_lea.vmem [#allocation8], %s292
        %s294 = smul.u32 16, %s29
        %s295 = smul.u32 16, %s29
        %s296 = smul.u32 16, %s29
        %v297 = vld [vmem:[%s248] sm:$0xff]
        %v298 = vld [vmem:[%s248 + $0x8] sm:$0xff]
        %v299 = vld [vmem:[%s248 + $0x10] sm:$0xff]
        %v300 = vld [vmem:[%s248 + $0x18] sm:$0xff]
        %v301 = vld [vmem:[%s248 + $0x20] sm:$0xff]
        %v302 = vld [vmem:[%s248 + $0x28] sm:$0xff]
        %v303 = vld [vmem:[%s248 + $0x30] sm:$0xff]
        %v304 = vld [vmem:[%s248 + $0x38] sm:$0xff]
        %v305 = vld [vmem:[%s248 + $0x40] sm:$0xff]
        %v306 = vld [vmem:[%s248 + $0x48] sm:$0xff]
        %v307 = vld [vmem:[%s248 + $0x50] sm:$0xff]
        %v308 = vld [vmem:[%s248 + $0x58] sm:$0xff]
        %v309 = vld [vmem:[%s248 + $0x60] sm:$0xff]
        %v310 = vld [vmem:[%s248 + $0x68] sm:$0xff]
        %v311 = vld [vmem:[%s248 + $0x70] sm:$0xff]
        %v312 = vld [vmem:[%s248 + $0x78] sm:$0xff]
        %v313 = vunpack.c.l.bf16 %v297
        %v314 = vunpack.c.h.bf16 %v297
        %v315 = vunpack.c.l.bf16 %v298
        %v316 = vunpack.c.h.bf16 %v298
        %v317 = vunpack.c.l.bf16 %v299
        %v318 = vunpack.c.h.bf16 %v299
        %v319 = vunpack.c.l.bf16 %v300
        %v320 = vunpack.c.h.bf16 %v300
        %v321 = vunpack.c.l.bf16 %v301
        %v322 = vunpack.c.h.bf16 %v301
        %v323 = vunpack.c.l.bf16 %v302
        %v324 = vunpack.c.h.bf16 %v302
        %v325 = vunpack.c.l.bf16 %v303
        %v326 = vunpack.c.h.bf16 %v303
        %v327 = vunpack.c.l.bf16 %v304
        %v328 = vunpack.c.h.bf16 %v304
        %v329 = vunpack.c.l.bf16 %v305
        %v330 = vunpack.c.h.bf16 %v305
        %v331 = vunpack.c.l.bf16 %v306
        %v332 = vunpack.c.h.bf16 %v306
        %v333 = vunpack.c.l.bf16 %v307
        %v334 = vunpack.c.h.bf16 %v307
        %v335 = vunpack.c.l.bf16 %v308
        %v336 = vunpack.c.h.bf16 %v308
        %v337 = vunpack.c.l.bf16 %v309
        %v338 = vunpack.c.h.bf16 %v309
        %v339 = vunpack.c.l.bf16 %v310
        %v340 = vunpack.c.h.bf16 %v310
        %v341 = vunpack.c.l.bf16 %v311
        %v342 = vunpack.c.h.bf16 %v311
        %v343 = vunpack.c.l.bf16 %v312
        %v344 = vunpack.c.h.bf16 %v312
        %v345 = vld [vmem:[%s258] sm:$0xff]
        %v346 = vld [vmem:[%s258 + $0x8] sm:$0xff]
        %v347 = vld [vmem:[%s258 + $0x10] sm:$0xff]
        %v348 = vld [vmem:[%s258 + $0x18] sm:$0xff]
        %v349 = vld [vmem:[%s258 + $0x20] sm:$0xff]
        %v350 = vld [vmem:[%s258 + $0x28] sm:$0xff]
        %v351 = vld [vmem:[%s258 + $0x30] sm:$0xff]
        %v352 = vld [vmem:[%s258 + $0x38] sm:$0xff]
        %v353 = vld [vmem:[%s258 + $0x40] sm:$0xff]
        %v354 = vld [vmem:[%s258 + $0x48] sm:$0xff]
        %v355 = vld [vmem:[%s258 + $0x50] sm:$0xff]
        %v356 = vld [vmem:[%s258 + $0x58] sm:$0xff]
        %v357 = vld [vmem:[%s258 + $0x60] sm:$0xff]
        %v358 = vld [vmem:[%s258 + $0x68] sm:$0xff]
        %v359 = vld [vmem:[%s258 + $0x70] sm:$0xff]
        %v360 = vld [vmem:[%s258 + $0x78] sm:$0xff]
        %v361 = vunpack.c.l.bf16 %v345
        %v362 = vunpack.c.h.bf16 %v345
        %v363 = vunpack.c.l.bf16 %v346
        %v364 = vunpack.c.h.bf16 %v346
        %v365 = vunpack.c.l.bf16 %v347
        %v366 = vunpack.c.h.bf16 %v347
        %v367 = vunpack.c.l.bf16 %v348
        %v368 = vunpack.c.h.bf16 %v348
        %v369 = vunpack.c.l.bf16 %v349
        %v370 = vunpack.c.h.bf16 %v349
        %v371 = vunpack.c.l.bf16 %v350
        %v372 = vunpack.c.h.bf16 %v350
        %v373 = vunpack.c.l.bf16 %v351
        %v374 = vunpack.c.h.bf16 %v351
        %v375 = vunpack.c.l.bf16 %v352
        %v376 = vunpack.c.h.bf16 %v352
        %v377 = vunpack.c.l.bf16 %v353
        %v378 = vunpack.c.h.bf16 %v353
        %v379 = vunpack.c.l.bf16 %v354
        %v380 = vunpack.c.h.bf16 %v354
        %v381 = vunpack.c.l.bf16 %v355
        %v382 = vunpack.c.h.bf16 %v355
        %v383 = vunpack.c.l.bf16 %v356
        %v384 = vunpack.c.h.bf16 %v356
        %v385 = vunpack.c.l.bf16 %v357
        %v386 = vunpack.c.h.bf16 %v357
        %v387 = vunpack.c.l.bf16 %v358
        %v388 = vunpack.c.h.bf16 %v358
        %v389 = vunpack.c.l.bf16 %v359
        %v390 = vunpack.c.h.bf16 %v359
        %v391 = vunpack.c.l.bf16 %v360
        %v392 = vunpack.c.h.bf16 %v360
        %v393 = vadd.f32 %v313, %v361
        %v394 = vadd.f32 %v314, %v362
        %v395 = vadd.f32 %v315, %v363
        %v396 = vadd.f32 %v316, %v364
        %v397 = vadd.f32 %v317, %v365
        %v398 = vadd.f32 %v318, %v366
        %v399 = vadd.f32 %v319, %v367
        %v400 = vadd.f32 %v320, %v368
        %v401 = vadd.f32 %v321, %v369
        %v402 = vadd.f32 %v322, %v370
        %v403 = vadd.f32 %v323, %v371
        %v404 = vadd.f32 %v324, %v372
        %v405 = vadd.f32 %v325, %v373
        %v406 = vadd.f32 %v326, %v374
        %v407 = vadd.f32 %v327, %v375
        %v408 = vadd.f32 %v328, %v376
        %v409 = vadd.f32 %v329, %v377
        %v410 = vadd.f32 %v330, %v378
        %v411 = vadd.f32 %v331, %v379
        %v412 = vadd.f32 %v332, %v380
        %v413 = vadd.f32 %v333, %v381
        %v414 = vadd.f32 %v334, %v382
        %v415 = vadd.f32 %v335, %v383
        %v416 = vadd.f32 %v336, %v384
        %v417 = vadd.f32 %v337, %v385
        %v418 = vadd.f32 %v338, %v386
        %v419 = vadd.f32 %v339, %v387
        %v420 = vadd.f32 %v340, %v388
        %v421 = vadd.f32 %v341, %v389
        %v422 = vadd.f32 %v342, %v390
        %v423 = vadd.f32 %v343, %v391
        %v424 = vadd.f32 %v344, %v392
        %v425 = vld [vmem:[#allocation7] sm:$0x3]
        %v426 = vld [vmem:[%s3] sm:$0x3]
        %v427 = vadd.f32 %v393, %v394
        %428 = vadd.xlane.f32.xlu0 %v427
        %v429 = vpop.xlane.xlu0 %428
        %v430 = vadd.f32 %v395, %v396
        %431 = vadd.xlane.f32.xlu0 %v430
        %v432 = vpop.xlane.xlu0 %431
        %v433 = vadd.f32 %v397, %v398
        %434 = vadd.xlane.f32.xlu0 %v433
        %v435 = vpop.xlane.xlu0 %434
        %v436 = vadd.f32 %v399, %v400
        %437 = vadd.xlane.f32.xlu0 %v436
        %v438 = vpop.xlane.xlu0 %437
        %v439 = vadd.f32 %v401, %v402
        %440 = vadd.xlane.f32.xlu0 %v439
        %v441 = vpop.xlane.xlu0 %440
        %v442 = vadd.f32 %v403, %v404
        %443 = vadd.xlane.f32.xlu0 %v442
        %v444 = vpop.xlane.xlu0 %443
        %v445 = vadd.f32 %v405, %v406
        %446 = vadd.xlane.f32.xlu0 %v445
        %v447 = vpop.xlane.xlu0 %446
        %v448 = vadd.f32 %v407, %v408
        %449 = vadd.xlane.f32.xlu0 %v448
        %v450 = vpop.xlane.xlu0 %449
        %v451 = vadd.f32 %v409, %v410
        %452 = vadd.xlane.f32.xlu0 %v451
        %v453 = vpop.xlane.xlu0 %452
        %v454 = vadd.f32 %v411, %v412
        %455 = vadd.xlane.f32.xlu0 %v454
        %v456 = vpop.xlane.xlu0 %455
        %v457 = vadd.f32 %v413, %v414
        %458 = vadd.xlane.f32.xlu0 %v457
        %v459 = vpop.xlane.xlu0 %458
        %v460 = vadd.f32 %v415, %v416
        %461 = vadd.xlane.f32.xlu0 %v460
        %v462 = vpop.xlane.xlu0 %461
        %v463 = vadd.f32 %v417, %v418
        %464 = vadd.xlane.f32.xlu0 %v463
        %v465 = vpop.xlane.xlu0 %464
        %v466 = vadd.f32 %v419, %v420
        %467 = vadd.xlane.f32.xlu0 %v466
        %v468 = vpop.xlane.xlu0 %467
        %v469 = vadd.f32 %v421, %v422
        %470 = vadd.xlane.f32.xlu0 %v469
        %v471 = vpop.xlane.xlu0 %470
        %v472 = vadd.f32 %v423, %v424
        %473 = vadd.xlane.f32.xlu0 %v472
        %v474 = vpop.xlane.xlu0 %473
        %v475 = vrcp.pop 256.0
        %v476 = vmul.f32 256.0, %v475
        %v477 = vsub.f32 1.0, %v476
        %v478 = vmul.f32 %v475, %v477
        %v479 = vadd.f32 %v475, %v478
        %vm480 = vweird.f32 %v475
        %v481 = vsel %vm480, %v475, %v479
        %v482 = vmul.f32 %v429, %v481
        %v483 = vmul.f32 %v432, %v481
        %v484 = vmul.f32 %v435, %v481
        %v485 = vmul.f32 %v438, %v481
        %v486 = vmul.f32 %v441, %v481
        %v487 = vmul.f32 %v444, %v481
        %v488 = vmul.f32 %v447, %v481
        %v489 = vmul.f32 %v450, %v481
        %v490 = vmul.f32 %v453, %v481
        %v491 = vmul.f32 %v456, %v481
        %v492 = vmul.f32 %v459, %v481
        %v493 = vmul.f32 %v462, %v481
        %v494 = vmul.f32 %v465, %v481
        %v495 = vmul.f32 %v468, %v481
        %v496 = vmul.f32 %v471, %v481
        %v497 = vmul.f32 %v474, %v481
        %v498 = vsub.f32 %v393, %v482
        %v499 = vsub.f32 %v394, %v482
        %v500 = vsub.f32 %v395, %v483
        %v501 = vsub.f32 %v396, %v483
        %v502 = vsub.f32 %v397, %v484
        %v503 = vsub.f32 %v398, %v484
        %v504 = vsub.f32 %v399, %v485
        %v505 = vsub.f32 %v400, %v485
        %v506 = vsub.f32 %v401, %v486
        %v507 = vsub.f32 %v402, %v486
        %v508 = vsub.f32 %v403, %v487
        %v509 = vsub.f32 %v404, %v487
        %v510 = vsub.f32 %v405, %v488
        %v511 = vsub.f32 %v406, %v488
        %v512 = vsub.f32 %v407, %v489
        %v513 = vsub.f32 %v408, %v489
        %v514 = vsub.f32 %v409, %v490
        %v515 = vsub.f32 %v410, %v490
        %v516 = vsub.f32 %v411, %v491
        %v517 = vsub.f32 %v412, %v491
        %v518 = vsub.f32 %v413, %v492
        %v519 = vsub.f32 %v414, %v492
        %v520 = vsub.f32 %v415, %v493
        %v521 = vsub.f32 %v416, %v493
        %v522 = vsub.f32 %v417, %v494
        %v523 = vsub.f32 %v418, %v494
        %v524 = vsub.f32 %v419, %v495
        %v525 = vsub.f32 %v420, %v495
        %v526 = vsub.f32 %v421, %v496
        %v527 = vsub.f32 %v422, %v496
        %v528 = vsub.f32 %v423, %v497
        %v529 = vsub.f32 %v424, %v497
        %v530 = vmul.f32 %v498, %v498
        %v531 = vmul.f32 %v499, %v499
        %v532 = vmul.f32 %v500, %v500
        %v533 = vmul.f32 %v501, %v501
        %v534 = vmul.f32 %v502, %v502
        %v535 = vmul.f32 %v503, %v503
        %v536 = vmul.f32 %v504, %v504
        %v537 = vmul.f32 %v505, %v505
        %v538 = vmul.f32 %v506, %v506
        %v539 = vmul.f32 %v507, %v507
        %v540 = vmul.f32 %v508, %v508
        %v541 = vmul.f32 %v509, %v509
        %v542 = vmul.f32 %v510, %v510
        %v543 = vmul.f32 %v511, %v511
        %v544 = vmul.f32 %v512, %v512
        %v545 = vmul.f32 %v513, %v513
        %v546 = vmul.f32 %v514, %v514
        %v547 = vmul.f32 %v515, %v515
        %v548 = vmul.f32 %v516, %v516
        %v549 = vmul.f32 %v517, %v517
        %v550 = vmul.f32 %v518, %v518
        %v551 = vmul.f32 %v519, %v519
        %v552 = vmul.f32 %v520, %v520
        %v553 = vmul.f32 %v521, %v521
        %v554 = vmul.f32 %v522, %v522
        %v555 = vmul.f32 %v523, %v523
        %v556 = vmul.f32 %v524, %v524
        %v557 = vmul.f32 %v525, %v525
        %v558 = vmul.f32 %v526, %v526
        %v559 = vmul.f32 %v527, %v527
        %v560 = vmul.f32 %v528, %v528
        %v561 = vmul.f32 %v529, %v529
        %v562 = vadd.f32 %v530, %v531
        %563 = vadd.xlane.f32.xlu0 %v562
        %v564 = vpop.xlane.xlu0 %563
        %v565 = vadd.f32 %v532, %v533
        %566 = vadd.xlane.f32.xlu0 %v565
        %v567 = vpop.xlane.xlu0 %566
        %v568 = vadd.f32 %v534, %v535
        %569 = vadd.xlane.f32.xlu0 %v568
        %v570 = vpop.xlane.xlu0 %569
        %v571 = vadd.f32 %v536, %v537
        %572 = vadd.xlane.f32.xlu0 %v571
        %v573 = vpop.xlane.xlu0 %572
        %v574 = vadd.f32 %v538, %v539
        %575 = vadd.xlane.f32.xlu0 %v574
        %v576 = vpop.xlane.xlu0 %575
        %v577 = vadd.f32 %v540, %v541
        %578 = vadd.xlane.f32.xlu0 %v577
        %v579 = vpop.xlane.xlu0 %578
        %v580 = vadd.f32 %v542, %v543
        %581 = vadd.xlane.f32.xlu0 %v580
        %v582 = vpop.xlane.xlu0 %581
        %v583 = vadd.f32 %v544, %v545
        %584 = vadd.xlane.f32.xlu0 %v583
        %v585 = vpop.xlane.xlu0 %584
        %v586 = vadd.f32 %v546, %v547
        %587 = vadd.xlane.f32.xlu0 %v586
        %v588 = vpop.xlane.xlu0 %587
        %v589 = vadd.f32 %v548, %v549
        %590 = vadd.xlane.f32.xlu0 %v589
        %v591 = vpop.xlane.xlu0 %590
        %v592 = vadd.f32 %v550, %v551
        %593 = vadd.xlane.f32.xlu0 %v592
        %v594 = vpop.xlane.xlu0 %593
        %v595 = vadd.f32 %v552, %v553
        %596 = vadd.xlane.f32.xlu0 %v595
        %v597 = vpop.xlane.xlu0 %596
        %v598 = vadd.f32 %v554, %v555
        %599 = vadd.xlane.f32.xlu0 %v598
        %v600 = vpop.xlane.xlu0 %599
        %v601 = vadd.f32 %v556, %v557
        %602 = vadd.xlane.f32.xlu0 %v601
        %v603 = vpop.xlane.xlu0 %602
        %v604 = vadd.f32 %v558, %v559
        %605 = vadd.xlane.f32.xlu0 %v604
        %v606 = vpop.xlane.xlu0 %605
        %v607 = vadd.f32 %v560, %v561
        %608 = vadd.xlane.f32.xlu0 %v607
        %v609 = vpop.xlane.xlu0 %608
        %v610 = vmul.f32 %v564, %v481
        %v611 = vmul.f32 %v567, %v481
        %v612 = vmul.f32 %v570, %v481
        %v613 = vmul.f32 %v573, %v481
        %v614 = vmul.f32 %v576, %v481
        %v615 = vmul.f32 %v579, %v481
        %v616 = vmul.f32 %v582, %v481
        %v617 = vmul.f32 %v585, %v481
        %v618 = vmul.f32 %v588, %v481
        %v619 = vmul.f32 %v591, %v481
        %v620 = vmul.f32 %v594, %v481
        %v621 = vmul.f32 %v597, %v481
        %v622 = vmul.f32 %v600, %v481
        %v623 = vmul.f32 %v603, %v481
        %v624 = vmul.f32 %v606, %v481
        %v625 = vmul.f32 %v609, %v481
        %v626 = vadd.f32 %v610, 1e-05
        %v627 = vadd.f32 %v611, 1e-05
        %v628 = vadd.f32 %v612, 1e-05
        %v629 = vadd.f32 %v613, 1e-05
        %v630 = vadd.f32 %v614, 1e-05
        %v631 = vadd.f32 %v615, 1e-05
        %v632 = vadd.f32 %v616, 1e-05
        %v633 = vadd.f32 %v617, 1e-05
        %v634 = vadd.f32 %v618, 1e-05
        %v635 = vadd.f32 %v619, 1e-05
        %v636 = vadd.f32 %v620, 1e-05
        %v637 = vadd.f32 %v621, 1e-05
        %v638 = vadd.f32 %v622, 1e-05
        %v639 = vadd.f32 %v623, 1e-05
        %v640 = vadd.f32 %v624, 1e-05
        %v641 = vadd.f32 %v625, 1e-05
        %v642 = vrsqrt.pop %v626
        %v643 = vmul.f32 %v642, %v626
        %v644 = vmul.f32 %v643, %v642
        %v645 = vmul.f32 0.5, %v644
        %v646 = vsub.f32 1.5, %v645
        %v647 = vmul.f32 %v642, %v646
        %vm648 = vweird.f32 %v626
        %vm649 = vweird.f32 %v642
        %vm650 = vmor %vm648, %vm649
        %v651 = vsel %vm650, %v642, %v647
        %v652 = vrsqrt.pop %v627
        %v653 = vmul.f32 %v652, %v627
        %v654 = vmul.f32 %v653, %v652
        %v655 = vmul.f32 0.5, %v654
        %v656 = vsub.f32 1.5, %v655
        %v657 = vmul.f32 %v652, %v656
        %vm658 = vweird.f32 %v627
        %vm659 = vweird.f32 %v652
        %vm660 = vmor %vm658, %vm659
        %v661 = vsel %vm660, %v652, %v657
        %v662 = vrsqrt.pop %v628
        %v663 = vmul.f32 %v662, %v628
        %v664 = vmul.f32 %v663, %v662
        %v665 = vmul.f32 0.5, %v664
        %v666 = vsub.f32 1.5, %v665
        %v667 = vmul.f32 %v662, %v666
        %vm668 = vweird.f32 %v628
        %vm669 = vweird.f32 %v662
        %vm670 = vmor %vm668, %vm669
        %v671 = vsel %vm670, %v662, %v667
        %v672 = vrsqrt.pop %v629
        %v673 = vmul.f32 %v672, %v629
        %v674 = vmul.f32 %v673, %v672
        %v675 = vmul.f32 0.5, %v674
        %v676 = vsub.f32 1.5, %v675
        %v677 = vmul.f32 %v672, %v676
        %vm678 = vweird.f32 %v629
        %vm679 = vweird.f32 %v672
        %vm680 = vmor %vm678, %vm679
        %v681 = vsel %vm680, %v672, %v677
        %v682 = vrsqrt.pop %v630
        %v683 = vmul.f32 %v682, %v630
        %v684 = vmul.f32 %v683, %v682
        %v685 = vmul.f32 0.5, %v684
        %v686 = vsub.f32 1.5, %v685
        %v687 = vmul.f32 %v682, %v686
        %vm688 = vweird.f32 %v630
        %vm689 = vweird.f32 %v682
        %vm690 = vmor %vm688, %vm689
        %v691 = vsel %vm690, %v682, %v687
        %v692 = vrsqrt.pop %v631
        %v693 = vmul.f32 %v692, %v631
        %v694 = vmul.f32 %v693, %v692
        %v695 = vmul.f32 0.5, %v694
        %v696 = vsub.f32 1.5, %v695
        %v697 = vmul.f32 %v692, %v696
        %vm698 = vweird.f32 %v631
        %vm699 = vweird.f32 %v692
        %vm700 = vmor %vm698, %vm699
        %v701 = vsel %vm700, %v692, %v697
        %v702 = vrsqrt.pop %v632
        %v703 = vmul.f32 %v702, %v632
        %v704 = vmul.f32 %v703, %v702
        %v705 = vmul.f32 0.5, %v704
        %v706 = vsub.f32 1.5, %v705
        %v707 = vmul.f32 %v702, %v706
        %vm708 = vweird.f32 %v632
        %vm709 = vweird.f32 %v702
        %vm710 = vmor %vm708, %vm709
        %v711 = vsel %vm710, %v702, %v707
        %v712 = vrsqrt.pop %v633
        %v713 = vmul.f32 %v712, %v633
        %v714 = vmul.f32 %v713, %v712
        %v715 = vmul.f32 0.5, %v714
        %v716 = vsub.f32 1.5, %v715
        %v717 = vmul.f32 %v712, %v716
        %vm718 = vweird.f32 %v633
        %vm719 = vweird.f32 %v712
        %vm720 = vmor %vm718, %vm719
        %v721 = vsel %vm720, %v712, %v717
        %v722 = vrsqrt.pop %v634
        %v723 = vmul.f32 %v722, %v634
        %v724 = vmul.f32 %v723, %v722
        %v725 = vmul.f32 0.5, %v724
        %v726 = vsub.f32 1.5, %v725
        %v727 = vmul.f32 %v722, %v726
        %vm728 = vweird.f32 %v634
        %vm729 = vweird.f32 %v722
        %vm730 = vmor %vm728, %vm729
        %v731 = vsel %vm730, %v722, %v727
        %v732 = vrsqrt.pop %v635
        %v733 = vmul.f32 %v732, %v635
        %v734 = vmul.f32 %v733, %v732
        %v735 = vmul.f32 0.5, %v734
        %v736 = vsub.f32 1.5, %v735
        %v737 = vmul.f32 %v732, %v736
        %vm738 = vweird.f32 %v635
        %vm739 = vweird.f32 %v732
        %vm740 = vmor %vm738, %vm739
        %v741 = vsel %vm740, %v732, %v737
        %v742 = vrsqrt.pop %v636
        %v743 = vmul.f32 %v742, %v636
        %v744 = vmul.f32 %v743, %v742
        %v745 = vmul.f32 0.5, %v744
        %v746 = vsub.f32 1.5, %v745
        %v747 = vmul.f32 %v742, %v746
        %vm748 = vweird.f32 %v636
        %vm749 = vweird.f32 %v742
        %vm750 = vmor %vm748, %vm749
        %v751 = vsel %vm750, %v742, %v747
        %v752 = vrsqrt.pop %v637
        %v753 = vmul.f32 %v752, %v637
        %v754 = vmul.f32 %v753, %v752
        %v755 = vmul.f32 0.5, %v754
        %v756 = vsub.f32 1.5, %v755
        %v757 = vmul.f32 %v752, %v756
        %vm758 = vweird.f32 %v637
        %vm759 = vweird.f32 %v752
        %vm760 = vmor %vm758, %vm759
        %v761 = vsel %vm760, %v752, %v757
        %v762 = vrsqrt.pop %v638
        %v763 = vmul.f32 %v762, %v638
        %v764 = vmul.f32 %v763, %v762
        %v765 = vmul.f32 0.5, %v764
        %v766 = vsub.f32 1.5, %v765
        %v767 = vmul.f32 %v762, %v766
        %vm768 = vweird.f32 %v638
        %vm769 = vweird.f32 %v762
        %vm770 = vmor %vm768, %vm769
        %v771 = vsel %vm770, %v762, %v767
        %v772 = vrsqrt.pop %v639
        %v773 = vmul.f32 %v772, %v639
        %v774 = vmul.f32 %v773, %v772
        %v775 = vmul.f32 0.5, %v774
        %v776 = vsub.f32 1.5, %v775
        %v777 = vmul.f32 %v772, %v776
        %vm778 = vweird.f32 %v639
        %vm779 = vweird.f32 %v772
        %vm780 = vmor %vm778, %vm779
        %v781 = vsel %vm780, %v772, %v777
        %v782 = vrsqrt.pop %v640
        %v783 = vmul.f32 %v782, %v640
        %v784 = vmul.f32 %v783, %v782
        %v785 = vmul.f32 0.5, %v784
        %v786 = vsub.f32 1.5, %v785
        %v787 = vmul.f32 %v782, %v786
        %vm788 = vweird.f32 %v640
        %vm789 = vweird.f32 %v782
        %vm790 = vmor %vm788, %vm789
        %v791 = vsel %vm790, %v782, %v787
        %v792 = vrsqrt.pop %v641
        %v793 = vmul.f32 %v792, %v641
        %v794 = vmul.f32 %v793, %v792
        %v795 = vmul.f32 0.5, %v794
        %v796 = vsub.f32 1.5, %v795
        %v797 = vmul.f32 %v792, %v796
        %vm798 = vweird.f32 %v641
        %vm799 = vweird.f32 %v792
        %vm800 = vmor %vm798, %vm799
        %v801 = vsel %vm800, %v792, %v797
        %v802 = vmul.f32 %v498, %v651
        %v803 = vmul.f32 %v499, %v651
        %v804 = vmul.f32 %v500, %v661
        %v805 = vmul.f32 %v501, %v661
        %v806 = vmul.f32 %v502, %v671
        %v807 = vmul.f32 %v503, %v671
        %v808 = vmul.f32 %v504, %v681
        %v809 = vmul.f32 %v505, %v681
        %v810 = vmul.f32 %v506, %v691
        %v811 = vmul.f32 %v507, %v691
        %v812 = vmul.f32 %v508, %v701
        %v813 = vmul.f32 %v509, %v701
        %v814 = vmul.f32 %v510, %v711
        %v815 = vmul.f32 %v511, %v711
        %v816 = vmul.f32 %v512, %v721
        %v817 = vmul.f32 %v513, %v721
        %v818 = vmul.f32 %v514, %v731
        %v819 = vmul.f32 %v515, %v731
        %v820 = vmul.f32 %v516, %v741
        %v821 = vmul.f32 %v517, %v741
        %v822 = vmul.f32 %v518, %v751
        %v823 = vmul.f32 %v519, %v751
        %v824 = vmul.f32 %v520, %v761
        %v825 = vmul.f32 %v521, %v761
        %v826 = vmul.f32 %v522, %v771
        %v827 = vmul.f32 %v523, %v771
        %v828 = vmul.f32 %v524, %v781
        %v829 = vmul.f32 %v525, %v781
        %v830 = vmul.f32 %v526, %v791
        %v831 = vmul.f32 %v527, %v791
        %v832 = vmul.f32 %v528, %v801
        %v833 = vmul.f32 %v529, %v801
        %v835 = vperm.slane %v425, 0
        %v836 = vperm.slane %v425, 1
        %v839 = vmul.f32 %v802, %v835
        %v840 = vmul.f32 %v803, %v836
        %v841 = vmul.f32 %v804, %v835
        %v842 = vmul.f32 %v805, %v836
        %v843 = vmul.f32 %v806, %v835
        %v844 = vmul.f32 %v807, %v836
        %v845 = vmul.f32 %v808, %v835
        %v846 = vmul.f32 %v809, %v836
        %v847 = vmul.f32 %v810, %v835
        %v848 = vmul.f32 %v811, %v836
        %v849 = vmul.f32 %v812, %v835
        %v850 = vmul.f32 %v813, %v836
        %v851 = vmul.f32 %v814, %v835
        %v852 = vmul.f32 %v815, %v836
        %v853 = vmul.f32 %v816, %v835
        %v854 = vmul.f32 %v817, %v836
        %v855 = vmul.f32 %v818, %v835
        %v856 = vmul.f32 %v819, %v836
        %v857 = vmul.f32 %v820, %v835
        %v858 = vmul.f32 %v821, %v836
        %v859 = vmul.f32 %v822, %v835
        %v860 = vmul.f32 %v823, %v836
        %v861 = vmul.f32 %v824, %v835
        %v862 = vmul.f32 %v825, %v836
        %v863 = vmul.f32 %v826, %v835
        %v864 = vmul.f32 %v827, %v836
        %v865 = vmul.f32 %v828, %v835
        %v866 = vmul.f32 %v829, %v836
        %v867 = vmul.f32 %v830, %v835
        %v868 = vmul.f32 %v831, %v836
        %v869 = vmul.f32 %v832, %v835
        %v870 = vmul.f32 %v833, %v836
        %v872 = vperm.slane %v426, 0
        %v873 = vperm.slane %v426, 1
        %v876 = vadd.f32 %v839, %v872
        %v877 = vadd.f32 %v840, %v873
        %v878 = vadd.f32 %v841, %v872
        %v879 = vadd.f32 %v842, %v873
        %v880 = vadd.f32 %v843, %v872
        %v881 = vadd.f32 %v844, %v873
        %v882 = vadd.f32 %v845, %v872
        %v883 = vadd.f32 %v846, %v873
        %v884 = vadd.f32 %v847, %v872
        %v885 = vadd.f32 %v848, %v873
        %v886 = vadd.f32 %v849, %v872
        %v887 = vadd.f32 %v850, %v873
        %v888 = vadd.f32 %v851, %v872
        %v889 = vadd.f32 %v852, %v873
        %v890 = vadd.f32 %v853, %v872
        %v891 = vadd.f32 %v854, %v873
        %v892 = vadd.f32 %v855, %v872
        %v893 = vadd.f32 %v856, %v873
        %v894 = vadd.f32 %v857, %v872
        %v895 = vadd.f32 %v858, %v873
        %v896 = vadd.f32 %v859, %v872
        %v897 = vadd.f32 %v860, %v873
        %v898 = vadd.f32 %v861, %v872
        %v899 = vadd.f32 %v862, %v873
        %v900 = vadd.f32 %v863, %v872
        %v901 = vadd.f32 %v864, %v873
        %v902 = vadd.f32 %v865, %v872
        %v903 = vadd.f32 %v866, %v873
        %v904 = vadd.f32 %v867, %v872
        %v905 = vadd.f32 %v868, %v873
        %v906 = vadd.f32 %v869, %v872
        %v907 = vadd.f32 %v870, %v873
        %v908 = vpack.c.bf16 %v877, %v876
        %v909 = vpack.c.bf16 %v879, %v878
        %v910 = vpack.c.bf16 %v881, %v880
        %v911 = vpack.c.bf16 %v883, %v882
        %v912 = vpack.c.bf16 %v885, %v884
        %v913 = vpack.c.bf16 %v887, %v886
        %v914 = vpack.c.bf16 %v889, %v888
        %v915 = vpack.c.bf16 %v891, %v890
        %v916 = vpack.c.bf16 %v893, %v892
        %v917 = vpack.c.bf16 %v895, %v894
        %v918 = vpack.c.bf16 %v897, %v896
        %v919 = vpack.c.bf16 %v899, %v898
        %v920 = vpack.c.bf16 %v901, %v900
        %v921 = vpack.c.bf16 %v903, %v902
        %v922 = vpack.c.bf16 %v905, %v904
        %v923 = vpack.c.bf16 %v907, %v906
        %924 = vst [vmem:[%s293] sm:$0xff] %v908
        %925 = vst [vmem:[%s293 + $0x8] sm:$0xff] %v909
        %926 = vst [vmem:[%s293 + $0x10] sm:$0xff] %v910
        %927 = vst [vmem:[%s293 + $0x18] sm:$0xff] %v911
        %928 = vst [vmem:[%s293 + $0x20] sm:$0xff] %v912
        %929 = vst [vmem:[%s293 + $0x28] sm:$0xff] %v913
        %930 = vst [vmem:[%s293 + $0x30] sm:$0xff] %v914
        %931 = vst [vmem:[%s293 + $0x38] sm:$0xff] %v915
        %932 = vst [vmem:[%s293 + $0x40] sm:$0xff] %v916
        %933 = vst [vmem:[%s293 + $0x48] sm:$0xff] %v917
        %934 = vst [vmem:[%s293 + $0x50] sm:$0xff] %v918
        %935 = vst [vmem:[%s293 + $0x58] sm:$0xff] %v919
        %936 = vst [vmem:[%s293 + $0x60] sm:$0xff] %v920
        %937 = vst [vmem:[%s293 + $0x68] sm:$0xff] %v921
        %938 = vst [vmem:[%s293 + $0x70] sm:$0xff] %v922
        %939 = vst [vmem:[%s293 + $0x78] sm:$0xff] %v923
        %s940 = sand.u32 %s142, 1
        %s941 = scalar_lea.sflag [#allocation4], %s940
        %s942 = sand.u32 %s142, 1
        %s943 = smul.addr %s942, 128
        %s944 = scalar_lea.vmem [#allocation8], %s943
        // Predicated region
        $region49: #{tpu_custom_call.1} parent=35 // pred_check
          %p945 = pneg %p152
        $region50: #{tpu_custom_call.1} parent=35 // pred_check_branch
          %947 = sbr.rel (%p945) target = $region52
        $region51: #{tpu_custom_call.1} parent=35 // pred_region
          %s948 = smul.u32 16, %s29
          %950 = vsyncadd %s941, 0
          %s951 = smul.addr %s948, 2
          %s952 = smul.addr %s28, 64
          %s953 = sadd.s32 %s951, %s952
          %s954 = smul.addr %s953, 4
          %s955 = scalar_lea.hbm %s4, %s954
          %s956 = sshll.u32 %s944, 4
          %s957 = int_to_ptr.vmem [resolvable:$true] %s956
          %s958 = sshll.u32 %s955, 4
          %s959 = int_to_ptr.hbm [resolvable:$true] %s958
          %964 = dma.vmem_to_hbm [thread:$0]  %s957, 2048, %s959, %s941, 128, 128, 8
        $region52: #{tpu_custom_call.1} parent=35 // pred_fallthru
          _
      $region36: #{tpu_custom_call.1} parent=5 // pred_fallthru
        _
      %p965 = scmp.le.s32.totalorder 2, %s19
      // Predicated region
      $region53: #{tpu_custom_call.1} parent=5 // pred_check
        %p966 = pneg %p965
      $region54: #{tpu_custom_call.1} parent=5 // pred_check_branch
        %968 = sbr.rel (%p966) target = $region56
      $region55: #{tpu_custom_call.1} parent=5 // pred_region
        %s969 = ssub.s32 %s19, 2
        // Predicated region
        $region57: #{tpu_custom_call.1} parent=55 // pred_check
          %p970 = pneg %p158
        $region58: #{tpu_custom_call.1} parent=55 // pred_check_branch
          %972 = sbr.rel (%p970) target = $region60
        $region59: #{tpu_custom_call.1} parent=55 // pred_region
          %s973 = sand.u32 %s143, 1
          %s974 = scalar_lea.sflag [#allocation4], %s973
          %s975 = sand.u32 %s143, 1
          %s976 = smul.addr %s975, 128
          %s977 = scalar_lea.vmem [#allocation8], %s976
          %979 = dma.done %s974, 2048
        $region60: #{tpu_custom_call.1} parent=55 // pred_fallthru
          _
      $region56: #{tpu_custom_call.1} parent=5 // pred_fallthru
        _
    $region6: #{tpu_custom_call.1} parent=1 // loop_footer
      %s23 = sadd.s32 1, %s19
    $region7: #{tpu_custom_call.1} parent=1 // loop_footer_branch
      %18 = sbr.rel target = $region3
    $region8: #{tpu_custom_call.1} parent=1 // loop_exit
      _
    %980 = vsyncpa [#allocation3], 1
    %s981 = scalar_lea.sflag [#allocation3], 1
    %982 = vsyncpa %s981, 1
    %983 = vsyncpa [#allocation6], 1
    %s984 = scalar_lea.sflag [#allocation6], 1
    %985 = vsyncpa %s984, 1
    %986 = vsyncpa [#allocation4], 1
    %s987 = scalar_lea.sflag [#allocation4], 1
    %988 = vsyncpa %s987, 1

</llo_original>
